<compile_context>
chip_gen: v7x
topology: tpu7x:2x2x1
jax: 0.10.0
libtpu: 0.0.40
codegen_flags: <defaults>
</compile_context>

<pallas_src>
import functools

import jax
import jax.numpy as jnp
from jax import lax
from jax.experimental import pallas as pl
from jax.experimental.pallas import tpu as pltpu

MARGIN = 0.5
# torch.nn.functional.cosine_similarity eps.  NOTE: torch clamps the *product*
# ||x1||*||x2|| at eps; we clamp each norm at eps (differs only when both
# norms are ~< 1e-4).
EPS = 1e-8


# ----------------------------------------------------------------------------
# Small path: whole problem in one VMEM block.
# ----------------------------------------------------------------------------
def _sim_contrastive_small_kernel(x1_ref, x2_ref, out_ref):
    x1 = x1_ref[...].astype(jnp.float32)          # (B, D)
    x2 = x2_ref[...].astype(jnp.float32)          # (B, D)
    B = x1.shape[0]

    # Pre-normalize rows (rsqrt on EUP): removes B^2 divides and the
    # sublane->lane transpose of the norm vector.
    inv1 = lax.rsqrt(jnp.maximum(jnp.sum(x1 * x1, axis=-1, keepdims=True), EPS * EPS))
    inv2 = lax.rsqrt(jnp.maximum(jnp.sum(x2 * x2, axis=-1, keepdims=True), EPS * EPS))
    x1n = x1 * inv1
    x2n = x2 * inv2

    # cos[i, j] = <x1n[i], x2n[j]>, contraction over the lane dim of BOTH
    # operands (NT form, no explicit x2.T in VMEM).
    cos = lax.dot_general(x1n, x2n, (((1,), (1,)), ((), ())),
                          preferred_element_type=jnp.float32)      # (B, B)

    # Diagonal via per-row dots -> no eye mask / iota over (B, B).
    diag = jnp.sum(x1n * x2n, axis=-1, keepdims=True)              # (B, 1)

    neg_all = jnp.sum(jnp.maximum(cos - MARGIN, 0.0))     # includes diagonal
    pos = jnp.sum(1.0 - diag)                             # positive pairs
    diag_corr = jnp.sum(jnp.maximum(diag - MARGIN, 0.0))  # remove diag from neg

    out_ref[0, 0] = (pos + neg_all - diag_corr) / B


def _loss_small(x1, x2):
    B, D = x1.shape
    out = pl.pallas_call(
        _sim_contrastive_small_kernel,
        out_shape=jax.ShapeDtypeStruct((1, 1), jnp.float32),
        in_specs=[pl.BlockSpec((B, D), lambda: (0, 0)),
                  pl.BlockSpec((B, D), lambda: (0, 0))],
        out_specs=pl.BlockSpec(memory_space=pltpu.MemorySpace.SMEM),
        compiler_params=pltpu.CompilerParams(vmem_limit_bytes=32 * 1024 * 1024),
        cost_estimate=pl.CostEstimate(
            flops=2 * B * B * D,
            transcendentals=2 * B,
            bytes_accessed=int(2 * B * D * x1.dtype.itemsize + 4)),
    )(x1, x2)
    return out[0, 0]


# ----------------------------------------------------------------------------
# Tiled path: (i, j) grid, reduction axis collapsed (block_k = D).
# ----------------------------------------------------------------------------
def _sim_contrastive_tiled_kernel(x1_ref, x2_ref, inv1_ref, inv2_ref, out_ref,
                                  *, op_dtype):
    a = x1_ref[...].astype(op_dtype)          # (bb, D) raw (un-normalized) rows
    b = x2_ref[...].astype(op_dtype)          # (bb, D) raw rows
    # raw[i, j] = <x1[i], x2[j]>: contract the lane dim of BOTH operands (NT
    # form, no materialized x2.T).
    # TODO(synk): if a bundle dump shows a per-tile vxpose here, pre-transpose
    # x2 to (D, B) in the wrapper and contract (((1,), (0,))) instead.
    raw = lax.dot_general(a, b, (((1,), (1,)), ((), ())),
                          preferred_element_type=jnp.float32)      # (bb, bb) f32
    # Fold the cosine normalization into the f32 accumulator:
    # 2*bb^2 VPU mults instead of 2*bb*D, and no normalized HBM copies.
    cos = raw * inv1_ref[...] * inv2_ref[...]
    partial = jnp.sum(jnp.maximum(cos - MARGIN, 0.0))
    # Lane-dense (8, 128) per-tile partial block: scalar in [0, 0], zeros
    # elsewhere; the tiny final reduction happens in XLA.  No cross-tile
    # dependency, so both grid axes can be "parallel" (v7x megacore).
    r = lax.broadcasted_iota(jnp.int32, out_ref.shape, 0)
    c = lax.broadcasted_iota(jnp.int32, out_ref.shape, 1)
    out_ref[...] = jnp.where((r == 0) & (c == 0), partial, 0.0)


def _choose_block_b(D, itemsize, requested, budget_bytes=20 * 1024 * 1024):
    """Largest tile height (multiple of 128) whose streamed inputs fit VMEM."""
    bb = max(128, int(requested))
    # Two streamed (bb, D) inputs, double-buffered: 4 * bb * D * itemsize.
    while bb > 128 and 4 * bb * D * itemsize > budget_bytes:
        bb //= 2
    # TODO(synk): if even bb=128 exceeds the budget (D in the tens of
    # thousands), a K-split grid would be needed; not required for this module.
    return bb


def _loss_tiled(x1, x2, *, block_b=256, use_bf16_matmul=True):
    B, D = x1.shape
    x1f = x1.astype(jnp.float32)
    x2f = x2.astype(jnp.float32)

    # (B, 1) / (1, B) inverse norms (f32), passed to the kernel instead of
    # materializing normalized HBM copies (saves a full 2*B*D round trip).
    inv1 = lax.rsqrt(jnp.maximum(jnp.sum(x1f * x1f, axis=-1, keepdims=True), EPS * EPS))
    inv2 = lax.rsqrt(jnp.maximum(jnp.sum(x2f * x2f, axis=-1, keepdims=True), EPS * EPS))
    inv2_row = inv2.reshape(1, B)

    # Diagonal / positive term: O(B*D), done here in f32 so the kernel body is
    # a uniform matmul + relu-sum over every tile (diagonal tiles included).
    diag = jnp.sum(x1f * x2f, axis=-1) * inv1[:, 0] * inv2[:, 0]           # (B,)
    pos = jnp.sum(1.0 - diag)
    diag_neg = jnp.sum(jnp.maximum(diag - MARGIN, 0.0))

    bb = _choose_block_b(D, x1.dtype.itemsize, block_b)
    nb = pl.cdiv(B, bb)
    Bp = nb * bb
    if Bp != B:
        # Zero-padded rows dot to 0 -> cos 0 -> relu(0 - margin) = 0: inert.
        x1p = jnp.pad(x1, ((0, Bp - B), (0, 0)))
        x2p = jnp.pad(x2, ((0, Bp - B), (0, 0)))
        inv1p = jnp.pad(inv1, ((0, Bp - B), (0, 0)), constant_values=1.0)
        inv2p = jnp.pad(inv2_row, ((0, 0), (0, Bp - B)), constant_values=1.0)
    else:
        x1p, x2p, inv1p, inv2p = x1, x2, inv1, inv2_row

    # bf16 MXU operands (f32 accumulation) are the fast path on v5e/v6e/v7x.
    op_dtype = (jnp.bfloat16
                if (use_bf16_matmul or x1.dtype == jnp.bfloat16)
                else jnp.float32)
    kernel = functools.partial(_sim_contrastive_tiled_kernel, op_dtype=op_dtype)

    in_isz = jnp.dtype(x1p.dtype).itemsize
    partials = pl.pallas_call(
        kernel,
        out_shape=jax.ShapeDtypeStruct((nb * 8, nb * 128), jnp.float32),
        grid_spec=pltpu.PrefetchScalarGridSpec(
            num_scalar_prefetch=0,
            # j innermost: the x1 (i, 0) block is constant across the inner
            # sweep, so Pallas keeps it VMEM-resident (fetched once per i).
            grid=(nb, nb),
            in_specs=[
                pl.BlockSpec((bb, D), lambda i, j: (i, 0)),
                pl.BlockSpec((bb, D), lambda i, j: (j, 0)),
                pl.BlockSpec((bb, 1), lambda i, j: (i, 0)),
                pl.BlockSpec((1, bb), lambda i, j: (0, j)),
            ],
            out_specs=pl.BlockSpec((8, 128), lambda i, j: (i, j)),
        ),
        compiler_params=pltpu.CompilerParams(
            # Per-tile outputs carry no cross-tile dependency -> both axes
            # parallel (lets v7x shard the grid across its 2 TensorCores).
            dimension_semantics=("parallel", "parallel"),
            vmem_limit_bytes=32 * 1024 * 1024),
        cost_estimate=pl.CostEstimate(
            flops=2 * Bp * Bp * D,
            transcendentals=0,
            bytes_accessed=int((nb + 1) * Bp * D * in_isz
                               + nb * nb * 8 * 128 * 4)),
    )(x1p, x2p, inv1p, inv2p)

    neg_all = jnp.sum(partials)     # includes the diagonal's relu term
    return (pos + neg_all - diag_neg) / B


# ----------------------------------------------------------------------------
# Dispatcher: gate by VMEM bytes, not tile divisibility.
# ----------------------------------------------------------------------------
def similarity_contrastive_loss(x1, x2, *, block_b=256, use_bf16_matmul=True,
                                small_path_max_bytes=12 * 1024 * 1024):
    """x1, x2: (B, D) arrays. Returns scalar float32 loss (margin=0.5).

    On v5e, block_b=128 matches the 4x128x128 MXU; 256 is the right shape for
    v6e/v7x (2x256x256) and still correct everywhere.
    """
    B, D = x1.shape
    # f32 working-set estimate of the single-block path: two (B, D) inputs,
    # the (B, B) cosine matrix, and slack for temporaries.
    est = 4 * (2 * B * D + 3 * B * B)
    if est <= small_path_max_bytes:
        return _loss_small(x1, x2)
    return _loss_tiled(x1, x2, block_b=block_b, use_bf16_matmul=use_bf16_matmul)


# ----------------------------------------------------------------------------
# Pure-JAX reference mirroring the PyTorch forward.
# ----------------------------------------------------------------------------
def _reference_loss(x1, x2, margin=MARGIN):
    x1 = x1.astype(jnp.float32)
    x2 = x2.astype(jnp.float32)
    n1 = jnp.maximum(jnp.linalg.norm(x1, axis=-1, keepdims=True), EPS)
    n2 = jnp.maximum(jnp.linalg.norm(x2, axis=-1, keepdims=True), EPS)
    cos = (x1 @ x2.T) / (n1 * n2.T)
    B = x1.shape[0]
    labels = jnp.eye(B, dtype=cos.dtype)
    pos = (1.0 - cos) * labels
    neg = jnp.clip(cos - margin, 0.0) * (1.0 - labels)
    return (pos.sum() + neg.sum()) / B


if __name__ == "__main__":
    key = jax.random.PRNGKey(0)
    ks = jax.random.split(key, 6)

    # 1) Small shapes consistent with the module's (B, D) embedding inputs
    #    (dispatcher -> single-block small path).
    B, D = 8, 32
    x1 = jax.random.normal(ks[0], (B, D), dtype=jnp.float32)
    x2 = jax.random.normal(ks[1], (B, D), dtype=jnp.float32)
    loss = similarity_contrastive_loss(x1, x2)
    jax.block_until_ready(loss)
    ref = _reference_loss(x1, x2)
    assert jnp.allclose(loss, ref, rtol=1e-5, atol=1e-5), (loss, ref)

    # 2) Tiled path, f32 MXU operands, non-divisible B exercises zero-padding
    #    (320 -> 512 with block_b=256, grid (2, 2)).  Correlated rows so the
    #    relu(margin) branch is active on every pair.
    Bt, Dt = 320, 384
    g = jax.random.normal(ks[2], (1, Dt), dtype=jnp.float32)
    y1 = g + 0.5 * jax.random.normal(ks[3], (Bt, Dt), dtype=jnp.float32)
    y2 = g + 0.5 * jax.random.normal(ks[4], (Bt, Dt), dtype=jnp.float32)
    loss_f32 = _loss_tiled(y1, y2, block_b=256, use_bf16_matmul=False)
    jax.block_until_ready(loss_f32)
    ref_t = _reference_loss(y1, y2)
    assert jnp.allclose(loss_f32, ref_t, rtol=1e-3, atol=1e-3), (loss_f32, ref_t)

    # 3) Tiled path, default bf16 MXU operands, grid (2, 2), no padding.
    Bb, Db = 512, 1024
    h = jax.random.normal(ks[5], (1, Db), dtype=jnp.float32)
    z1 = h + 0.5 * jax.random.normal(ks[0], (Bb, Db), dtype=jnp.float32)
    z2 = h + 0.5 * jax.random.normal(ks[1], (Bb, Db), dtype=jnp.float32)
    loss_bf16 = _loss_tiled(z1, z2, block_b=256, use_bf16_matmul=True)
    jax.block_until_ready(loss_bf16)
    ref_b = _reference_loss(z1, z2)
    assert jnp.allclose(loss_bf16, ref_b, rtol=5e-3, atol=5e-3), (loss_bf16, ref_b)

    print("KERNEL_OK")
</pallas_src>

<mosaic_0001>
module attributes {stable_mosaic.version = 11 : i64} {
  func.func @_sim_contrastive_small_kernel(%arg0: memref<8x32xf32, #tpu.memory_space<vmem>>, %arg1: memref<8x32xf32, #tpu.memory_space<vmem>>, %arg2: memref<1x1xf32, #tpu.memory_space<smem>>) attributes {dimension_semantics = [], scalar_prefetch = 0 : i64, scratch_operands = 0 : i64, tpu.core_type = #tpu.core_type<tc>} {
    %c0 = arith.constant 0 : index
    %c0_0 = arith.constant 0 : index
    %0 = vector.load %arg0[%c0, %c0_0] : memref<8x32xf32, #tpu.memory_space<vmem>>, vector<8x32xf32>
    %c0_1 = arith.constant 0 : index
    %c0_2 = arith.constant 0 : index
    %1 = vector.load %arg1[%c0_1, %c0_2] : memref<8x32xf32, #tpu.memory_space<vmem>>, vector<8x32xf32>
    %2 = arith.mulf %0, %0 : vector<8x32xf32>
    %cst = arith.constant dense<0.000000e+00> : vector<8xf32>
    %3 = vector.multi_reduction <add>, %2, %cst [1] : vector<8x32xf32> to vector<8xf32>
    %4 = vector.shape_cast %3 : vector<8xf32> to vector<8x1xf32>
    %cst_3 = arith.constant 1.000000e-16 : f32
    %5 = vector.broadcast %cst_3 : f32 to vector<8x1xf32>
    %6 = arith.maximumf %4, %5 : vector<8x1xf32>
    %7 = math.rsqrt %6 : vector<8x1xf32>
    %8 = arith.mulf %1, %1 : vector<8x32xf32>
    %cst_4 = arith.constant dense<0.000000e+00> : vector<8xf32>
    %9 = vector.multi_reduction <add>, %8, %cst_4 [1] : vector<8x32xf32> to vector<8xf32>
    %10 = vector.shape_cast %9 : vector<8xf32> to vector<8x1xf32>
    %cst_5 = arith.constant 1.000000e-16 : f32
    %11 = vector.broadcast %cst_5 : f32 to vector<8x1xf32>
    %12 = arith.maximumf %10, %11 : vector<8x1xf32>
    %13 = math.rsqrt %12 : vector<8x1xf32>
    %14 = vector.broadcast %7 : vector<8x1xf32> to vector<8x32xf32>
    %15 = arith.mulf %0, %14 : vector<8x32xf32>
    %16 = vector.broadcast %13 : vector<8x1xf32> to vector<8x32xf32>
    %17 = arith.mulf %1, %16 : vector<8x32xf32>
    %cst_6 = arith.constant dense<0.000000e+00> : vector<8x8xf32>
    %18 = tpu.matmul %15, %17, %cst_6 {dimension_numbers = #tpu.dot_dimension_numbers<[1], [1], [0], [0], [0, 0, 1, 0], [], []>} : vector<8x32xf32>, vector<8x32xf32>, vector<8x8xf32> -> vector<8x8xf32>
    %19 = arith.mulf %15, %17 : vector<8x32xf32>
    %cst_7 = arith.constant dense<0.000000e+00> : vector<8xf32>
    %20 = vector.multi_reduction <add>, %19, %cst_7 [1] : vector<8x32xf32> to vector<8xf32>
    %21 = vector.shape_cast %20 : vector<8xf32> to vector<8x1xf32>
    %cst_8 = arith.constant 5.000000e-01 : f32
    %22 = vector.broadcast %cst_8 : f32 to vector<8x8xf32>
    %23 = arith.subf %18, %22 : vector<8x8xf32>
    %cst_9 = arith.constant 0.000000e+00 : f32
    %24 = vector.broadcast %cst_9 : f32 to vector<8x8xf32>
    %25 = arith.maximumf %23, %24 : vector<8x8xf32>
    %26 = vector.shape_cast %25 : vector<8x8xf32> to vector<1x8x8xf32>
    %cst_10 = arith.constant dense<0.000000e+00> : vector<1xf32>
    %27 = vector.multi_reduction <add>, %26, %cst_10 [1, 2] : vector<1x8x8xf32> to vector<1xf32>
    %28 = vector.shape_cast %27 : vector<1xf32> to vector<1x1x1xf32>
    %29 = vector.extract %28[0, 0, 0] : f32 from vector<1x1x1xf32>
    %cst_11 = arith.constant 1.000000e+00 : f32
    %30 = vector.broadcast %cst_11 : f32 to vector<8x1xf32>
    %31 = arith.subf %30, %21 : vector<8x1xf32>
    %32 = vector.shape_cast %31 : vector<8x1xf32> to vector<1x8x1xf32>
    %cst_12 = arith.constant dense<0.000000e+00> : vector<1xf32>
    %33 = vector.multi_reduction <add>, %32, %cst_12 [1, 2] : vector<1x8x1xf32> to vector<1xf32>
    %34 = vector.shape_cast %33 : vector<1xf32> to vector<1x1x1xf32>
    %35 = vector.extract %34[0, 0, 0] : f32 from vector<1x1x1xf32>
    %cst_13 = arith.constant 5.000000e-01 : f32
    %36 = vector.broadcast %cst_13 : f32 to vector<8x1xf32>
    %37 = arith.subf %21, %36 : vector<8x1xf32>
    %cst_14 = arith.constant 0.000000e+00 : f32
    %38 = vector.broadcast %cst_14 : f32 to vector<8x1xf32>
    %39 = arith.maximumf %37, %38 : vector<8x1xf32>
    %40 = vector.shape_cast %39 : vector<8x1xf32> to vector<1x8x1xf32>
    %cst_15 = arith.constant dense<0.000000e+00> : vector<1xf32>
    %41 = vector.multi_reduction <add>, %40, %cst_15 [1, 2] : vector<1x8x1xf32> to vector<1xf32>
    %42 = vector.shape_cast %41 : vector<1xf32> to vector<1x1x1xf32>
    %43 = vector.extract %42[0, 0, 0] : f32 from vector<1x1x1xf32>
    %44 = arith.addf %35, %29 : f32
    %45 = arith.subf %44, %43 : f32
    %cst_16 = arith.constant 8.000000e+00 : f32
    %46 = arith.divf %45, %cst_16 : f32
    %c0_17 = arith.constant 0 : index
    %c0_18 = arith.constant 0 : index
    %47 = memref.load %arg2[%c0_17, %c0_18] : memref<1x1xf32, #tpu.memory_space<smem>>
    memref.store %46, %arg2[%c0_17, %c0_18] : memref<1x1xf32, #tpu.memory_space<smem>>
    return
  }
}

</mosaic_0001>

<llo_original>
// kernel: tpu_custom_call.1
$region0: #{tpu_custom_call.1}
  #allocation0 [shape = 'u32[]', space=smem, size = 0x4, offset = 0x4, fixed_abs, tag = 'smem constant byte address 0x4 - core index']
  #allocation1 [shape = 'u32[144,128]{1,0:T(1,128)}', space=vmem, size = 0x12000, scoped, tag = 'internal scratch']
  %s0 = inlined_call_operand.hbm [shape: f32[8,32], index: 0, kind: input, shape index: {}]
  %s1 = inlined_call_operand.hbm [shape: f32[8,32], index: 1, kind: input, shape index: {}]
  %s2 = inlined_call_operand.hbm [shape: f32[1,1], index: 2, kind: output, shape index: {}]
  %s3 = sld [smem:[#allocation0]]
  $region26: #{tpu_custom_call.1} parent=0
    _
  %s5 = ssub.s32 1, %s3
  %s6 = scalar_select 0, %s5, %s3
  $region1: #{tpu_custom_call.1} parent=0
    #allocation2 [shape = 'u8[4096]{0}', space=vmem, size = 0x1000, scoped, tag = 'input window, operand 0, single buffered']
    #allocation3 [shape = 's32[1]{0}', space=sflag, size = 0x4, scoped, tag = 'scoped memory for tpu_custom_call.1']
    #allocation4 [shape = 's32[1]{0}', space=sflag, size = 0x4, scoped, tag = 'scoped memory for tpu_custom_call.1']
    #allocation5 [shape = 'u8[4096]{0}', space=vmem, size = 0x1000, scoped, tag = 'input window, operand 1, single buffered']
    #allocation6 [shape = 's32[1]{0}', space=sflag, size = 0x4, scoped, tag = 'scoped memory for tpu_custom_call.1']
    #allocation7 [shape = 'u8[512]{0}', space=smem, size = 0x200, scoped, tag = 'output window, operand 0, single buffered']
    %7 = vsyncpa [#allocation3], 0
    %8 = vsyncpa [#allocation6], 0
    %9 = vsyncpa [#allocation4], 0
    // Predicated region
    $region2: #{tpu_custom_call.1} parent=1 // pred_check
      _
    $region3: #{tpu_custom_call.1} parent=1 // pred_check_branch
      %11 = sbr.rel (0) target = $region5
    $region4: #{tpu_custom_call.1} parent=1 // pred_region
      %s13 = ssub.s32 128, 128
      %14 = vsyncadd [#allocation3], %s13
      %s16 = sshll.u32 [#allocation2], 4
      %s17 = int_to_ptr.vmem [resolvable:$true] %s16
      %19 = dma.hbm_to_vmem [thread:$0]  %s0, 128, %s17, [#allocation3]
    $region5: #{tpu_custom_call.1} parent=1 // pred_fallthru
      _
    // Predicated region
    $region6: #{tpu_custom_call.1} parent=1 // pred_check
      _
    $region7: #{tpu_custom_call.1} parent=1 // pred_check_branch
      %21 = sbr.rel (0) target = $region9
    $region8: #{tpu_custom_call.1} parent=1 // pred_region
      %s23 = ssub.s32 128, 128
      %24 = vsyncadd [#allocation6], %s23
      %s26 = sshll.u32 [#allocation5], 4
      %s27 = int_to_ptr.vmem [resolvable:$true] %s26
      %29 = dma.hbm_to_vmem [thread:$0]  %s1, 128, %s27, [#allocation6]
    $region9: #{tpu_custom_call.1} parent=1 // pred_fallthru
      _
    // Predicated region
    $region10: #{tpu_custom_call.1} parent=1 // pred_check
      _
    $region11: #{tpu_custom_call.1} parent=1 // pred_check_branch
      %31 = sbr.rel (0) target = $region13
    $region12: #{tpu_custom_call.1} parent=1 // pred_region
      %32 = dma.done [#allocation3], 128
    $region13: #{tpu_custom_call.1} parent=1 // pred_fallthru
      _
    // Predicated region
    $region14: #{tpu_custom_call.1} parent=1 // pred_check
      _
    $region15: #{tpu_custom_call.1} parent=1 // pred_check_branch
      %34 = sbr.rel (0) target = $region17
    $region16: #{tpu_custom_call.1} parent=1 // pred_region
      %35 = dma.done [#allocation6], 128
    $region17: #{tpu_custom_call.1} parent=1 // pred_fallthru
      _
    %v36 = vld [vmem:[#allocation2] sm:$0xff]
    %v37 = vld [vmem:[#allocation5] sm:$0xff]
    %v38 = vmul.f32 %v36, %v36
    %vm39 = vcmask 261120
    %v40 = vsel %vm39, %v38, 0.0
    %41 = vadd.xlane.f32.xlu0 %v40
    %v42 = vpop.xlane.xlu0 %41
    %v43 = vmax.f32 %v42, 1e-16
    %v44 = vrsqrt.pop %v43
    %v45 = vmul.f32 %v37, %v37
    %v46 = vsel %vm39, %v45, 0.0
    %47 = vadd.xlane.f32.xlu0 %v46
    %v48 = vpop.xlane.xlu0 %47
    %v49 = vmax.f32 %v48, 1e-16
    %v50 = vrsqrt.pop %v49
    %v51 = vmul.f32 %v36, %v44
    %v52 = vmul.f32 %v37, %v50
    %v54 = vsel %vm39, %v51, 0
    %v57 = vsel %vm39, %v52, 0
    %59 = vmatprep.subr.mxu0 0.0
    %60 = vmatpush1.xpose.msra.mxu0 %v57
    %61 = vmatprep.subr.mxu0 0.0
    %62 = vmatpush1.xpose.msra.mxu0 0.0
    %63 = vmatprep.subr.mxu0 0.0
    %64 = vmatpush1.xpose.msra.mxu0 0.0
    %65 = vmatprep.subr.mxu0 0.0
    %66 = vmatpush1.xpose.msra.mxu0 0.0
    %67 = vmatprep.subr.mxu0 0.0
    %68 = vmatpush1.xpose.msra.mxu0 0.0
    %69 = vmatprep.subr.mxu0 0.0
    %70 = vmatpush1.xpose.msra.mxu0 0.0
    %71 = vmatprep.subr.mxu0 0.0
    %72 = vmatpush1.xpose.msra.mxu0 0.0
    %73 = vmatprep.subr.mxu0 0.0
    %74 = vmatpush1.xpose.msra.mxu0 0.0
    %75 = vmatprep.subr.mxu0 0.0
    %76 = vmatpush1.xpose.msra.mxu0 0.0
    %77 = vmatprep.subr.mxu0 0.0
    %78 = vmatpush1.xpose.msra.mxu0 0.0
    %79 = vmatprep.subr.mxu0 0.0
    %80 = vmatpush1.xpose.msra.mxu0 0.0
    %81 = vmatprep.subr.mxu0 0.0
    %82 = vmatpush1.xpose.msra.mxu0 0.0
    %83 = vmatprep.subr.mxu0 0.0
    %84 = vmatpush1.xpose.msra.mxu0 0.0
    %85 = vmatprep.subr.mxu0 0.0
    %86 = vmatpush1.xpose.msra.mxu0 0.0
    %87 = vmatprep.subr.mxu0 0.0
    %88 = vmatpush1.xpose.msra.mxu0 0.0
    %89 = vmatprep.subr.mxu0 0.0
    %90 = vmatpush1.xpose.msra.mxu0 0.0
    %91 = vmatprep.subr.mxu0 0.0
    %92 = vmatpush1.xpose.msra.mxu0 0.0
    %93 = vmatprep.subr.mxu0 0.0
    %94 = vmatpush1.xpose.msra.mxu0 0.0
    %95 = vmatprep.subr.mxu0 0.0
    %96 = vmatpush1.xpose.msra.mxu0 0.0
    %97 = vmatprep.subr.mxu0 0.0
    %98 = vmatpush1.xpose.msra.mxu0 0.0
    %99 = vmatprep.subr.mxu0 0.0
    %100 = vmatpush1.xpose.msra.mxu0 0.0
    %101 = vmatprep.subr.mxu0 0.0
    %102 = vmatpush1.xpose.msra.mxu0 0.0
    %103 = vmatprep.subr.mxu0 0.0
    %104 = vmatpush1.xpose.msra.mxu0 0.0
    %105 = vmatprep.subr.mxu0 0.0
    %106 = vmatpush1.xpose.msra.mxu0 0.0
    %107 = vmatprep.subr.mxu0 0.0
    %108 = vmatpush1.xpose.msra.mxu0 0.0
    %109 = vmatprep.subr.mxu0 0.0
    %110 = vmatpush1.xpose.msra.mxu0 0.0
    %111 = vmatprep.subr.mxu0 0.0
    %112 = vmatpush1.xpose.msra.mxu0 0.0
    %113 = vmatprep.subr.mxu0 0.0
    %114 = vmatpush1.xpose.msra.mxu0 0.0
    %115 = vmatprep.subr.mxu0 0.0
    %116 = vmatpush1.xpose.msra.mxu0 0.0
    %117 = vmatprep.subr.mxu0 0.0
    %118 = vmatpush1.xpose.msra.mxu0 0.0
    %119 = vmatprep.subr.mxu0 0.0
    %120 = vmatpush1.xpose.msra.mxu0 0.0
    %121 = vmatprep.subr.mxu0 0.0
    %122 = vmatpush1.xpose.msra.mxu0 0.0
    %123 = vmatprep.mubr.f32.mxu0 0.0
    %124 = vmatmul.mubr.f32.gmra.mrb[0].mxu0 %v54
    %v125 = vpop.f32.mrb[0].mxu0
    %v126 = vadd.f32 0.0, %v125
    %v127 = vpop.f32.mrb[0].mxu0
    %128 = vdwg.mxu0
    %v129 = vmul.f32 %v51, %v52
    %v130 = vsel %vm39, %v129, 0.0
    %131 = vadd.xlane.f32.xlu0 %v130
    %v132 = vpop.xlane.xlu0 %131
    %v133 = vsub.f32 %v126, 0.5
    %v134 = vmax.f32 %v133, 0.0
    %vm135 = vcmask 64512
    %v136 = vsel %vm135, %v134, 0.0
    %137 = vadd.xlane.f32.xlu0 %v136
    %v138 = vpop.xlane.xlu0 %137
    %v139 = vrot.slane %v138, 4
    %v140 = vadd.f32 %v138, %v139
    %v141 = vrot.slane %v140, 2
    %v142 = vadd.f32 %v140, %v141
    %v143 = vrot.slane %v142, 1
    %v144 = vadd.f32 %v142, %v143
    %s145 = vtos %v144
    %v146 = vsub.f32 1.0, %v132
    %vm147 = vcmask 7168
    %v148 = vsel %vm147, %v146, 0.0
    %149 = vadd.xlane.f32.xlu0 %v148
    %v150 = vpop.xlane.xlu0 %149
    %v151 = vrot.slane %v150, 4
    %v152 = vadd.f32 %v150, %v151
    %v153 = vrot.slane %v152, 2
    %v154 = vadd.f32 %v152, %v153
    %v155 = vrot.slane %v154, 1
    %v156 = vadd.f32 %v154, %v155
    %s157 = vtos %v156
    %v158 = vsub.f32 %v132, 0.5
    %v159 = vmax.f32 %v158, 0.0
    %v160 = vsel %vm147, %v159, 0.0
    %161 = vadd.xlane.f32.xlu0 %v160
    %v162 = vpop.xlane.xlu0 %161
    %v163 = vrot.slane %v162, 4
    %v164 = vadd.f32 %v162, %v163
    %v165 = vrot.slane %v164, 2
    %v166 = vadd.f32 %v164, %v165
    %v167 = vrot.slane %v166, 1
    %v168 = vadd.f32 %v166, %v167
    %s169 = vtos %v168
    %s170 = sadd.f32 %s157, %s145
    %s171 = ssub.f32 %s170, %s169
    %v172 = vrcp.pop 8.0
    %s173 = vtos %v172
    %s174 = smul.f32 %s171, %s173
    %s175 = scalar_lea.smem [#allocation7], 0
    %176 = sst [smem:[%s175]] %s174
    // Predicated region
    $region18: #{tpu_custom_call.1} parent=1 // pred_check
      _
    $region19: #{tpu_custom_call.1} parent=1 // pred_check_branch
      %178 = sbr.rel (0) target = $region21
    $region20: #{tpu_custom_call.1} parent=1 // pred_region
      %s180 = ssub.s32 16, 16
      %181 = vsyncadd [#allocation4], %s180
      %184 = dma.smem_to_hbm [#allocation7], 16, %s2, [#allocation4]
    $region21: #{tpu_custom_call.1} parent=1 // pred_fallthru
      _
    // Predicated region
    $region22: #{tpu_custom_call.1} parent=1 // pred_check
      _
    $region23: #{tpu_custom_call.1} parent=1 // pred_check_branch
      %186 = sbr.rel (0) target = $region25
    $region24: #{tpu_custom_call.1} parent=1 // pred_region
      %187 = dma.done [#allocation4], 16
    $region25: #{tpu_custom_call.1} parent=1 // pred_fallthru
      _
    %188 = sfence
    %189 = vsyncpa [#allocation3], 1
    %190 = vsyncpa [#allocation6], 1
    %191 = vsyncpa [#allocation4], 1

</llo_original>
